<compile_context>
chip_gen: v7x
topology: tpu7x:2x2x1
jax: 0.10.0
libtpu: 0.0.40
codegen_flags: <defaults>
</compile_context>

<pallas_src>
import jax
import jax.numpy as jnp
from jax.experimental import pallas as pl
from jax.experimental.pallas import tpu as pltpu


def _round_up(x, m):
    return ((x + m - 1) // m) * m


def _gate_fusion_kernel(z_ref, w_ref, b_ref, o_ref):
    """One batch tile: fused gate+fin matmul, sigmoid, gated lane reduce."""
    # z_ref: (TB, K_pad) compute dtype; w_ref: (K_pad, 2*NH) compute dtype
    # b_ref: (1, 2*NH) f32            ; o_ref: (TB, 1) f32
    p = jnp.dot(z_ref[...], w_ref[...], preferred_element_type=jnp.float32)
    p = p + b_ref[...]                      # f32 bias / elementwise path
    nh = p.shape[-1] // 2
    logits = p[:, :nh]                      # gate logits in lanes 0..M-1
    s = p[:, nh:]                           # fin partials in lanes 0..M-1, 0 elsewhere
    gated = jax.nn.sigmoid(logits) * s      # lanes >= M: sigmoid(.)*0 == 0
    o_ref[...] = jnp.sum(gated, axis=-1, keepdims=True).astype(o_ref.dtype)


def gate_fusion_forward(zs, proj_params, gate_params, w_fin, *,
                        block_b=512, compute_dtype=jnp.float32):
    """GateFusion forward.

    zs          : list of (B, d_m) f32 modality latents.
    proj_params : list; None for identity modalities (d_m == fusion_lat), else
                  (Wp, bp) with Wp: (d_m, fusion_lat), bp: (fusion_lat,)  [(in, out)].
    gate_params : list of (wg, bg) with wg: (fusion_lat, 1), bg: (1,).
    w_fin       : (fusion_lat, 1), no bias.
    Returns     : (B,) f32.
    """
    M = len(zs)
    assert M <= 128, "more than 128 modalities not supported by this packing"
    B = zs[0].shape[0]
    dims = [z.shape[1] for z in zs]
    fusion_lat = w_fin.shape[0]

    NH = 128                                   # half of the fused matmul N dim
    K_concat = sum(dims)
    K_pad = _round_up(K_concat, 128)

    TB = min(block_b, _round_up(B, 8))
    # Keep >= 2 grid steps when possible so both v7x TensorCores get work.
    if _round_up(B, TB) == TB and TB > 8:
        TB = max(8, _round_up(TB // 2, 8))
    B_pad = _round_up(B, TB)

    # ---- fold projection, gate and fin into one (K_pad, 2*NH) weight --------
    #   column m        : Wp_m @ wg_m   (gate logit computed directly from z_m)
    #   column NH + m   : Wp_m @ w_fin  (fin contribution computed from z_m)
    # (identity modalities use wg_m / w_fin directly; all folding done in f32)
    W = jnp.zeros((K_pad, 2 * NH), jnp.float32)
    bias = jnp.zeros((1, 2 * NH), jnp.float32)
    off = 0
    for m, (pp, (wg, bg)) in enumerate(zip(proj_params, gate_params)):
        d = dims[m]
        if pp is None:                         # nn.Identity (d == fusion_lat)
            wg_eff = wg[:, 0]
            wf_eff = w_fin[:, 0]
            bg_eff = bg[0]
            bf_eff = jnp.float32(0.0)
        else:
            wp, bp = pp                        # wp: (d, fusion_lat), bp: (fusion_lat,)
            wg_eff = wp @ wg[:, 0]
            wf_eff = wp @ w_fin[:, 0]
            bg_eff = bp @ wg[:, 0] + bg[0]
            bf_eff = bp @ w_fin[:, 0]
        W = W.at[off:off + d, m].set(wg_eff)
        W = W.at[off:off + d, NH + m].set(wf_eff)
        bias = bias.at[0, m].set(bg_eff)
        bias = bias.at[0, NH + m].set(bf_eff)
        off += d

    # ---- pack all modalities along the lane axis, directly in compute dtype --
    z_cat = jnp.concatenate([z.astype(compute_dtype) for z in zs], axis=1)
    z_cat = jnp.pad(z_cat, ((0, B_pad - B), (0, K_pad - K_concat)))

    Wc = W.astype(compute_dtype)               # MXU inputs; accumulation stays f32

    grid = (B_pad // TB,)
    out = pl.pallas_call(
        _gate_fusion_kernel,
        out_shape=jax.ShapeDtypeStruct((B_pad, 1), jnp.float32),
        grid_spec=pltpu.PrefetchScalarGridSpec(
            num_scalar_prefetch=0,
            grid=grid,
            in_specs=[
                pl.BlockSpec((TB, K_pad), lambda i: (i, 0)),       # z: streams over batch
                pl.BlockSpec((K_pad, 2 * NH), lambda i: (0, 0)),   # fused weight: resident
                pl.BlockSpec((1, 2 * NH), lambda i: (0, 0)),       # fused bias: resident
            ],
            out_specs=pl.BlockSpec((TB, 1), lambda i: (i, 0)),
        ),
        compiler_params=pltpu.CompilerParams(
            dimension_semantics=("parallel",),
        ),
    )(z_cat, Wc, bias)

    return out[:B, 0]


def gate_fusion_reference(zs, proj_params, gate_params, w_fin):
    """Plain-JAX replica of the PyTorch forward (for correctness checks)."""
    z_sum = None
    for z, pp, (wg, bg) in zip(zs, proj_params, gate_params):
        h = z if pp is None else z @ pp[0] + pp[1]
        g = jax.nn.sigmoid(h @ wg + bg)              # (B, 1)
        gated = g * h
        z_sum = gated if z_sum is None else z_sum + gated
    return (z_sum @ w_fin)[:, 0]


def init_gate_fusion_params(key, dims, fusion_lat=None):
    """Deterministic init mirroring nn.Linear default (uniform +/- 1/sqrt(fan_in)).
    Weights are pre-transposed to (in_features, out_features)."""
    fusion_lat = fusion_lat or max(dims)
    keys = jax.random.split(key, 2 * len(dims) + 1)
    proj_params, gate_params = [], []
    for m, d in enumerate(dims):
        if d == fusion_lat:
            proj_params.append(None)                 # nn.Identity
        else:
            b = 1.0 / jnp.sqrt(d)
            kw, kb = jax.random.split(keys[2 * m])
            wp = jax.random.uniform(kw, (d, fusion_lat), jnp.float32, -b, b)
            bp = jax.random.uniform(kb, (fusion_lat,), jnp.float32, -b, b)
            proj_params.append((wp, bp))
        bg_b = 1.0 / jnp.sqrt(fusion_lat)
        kw, kb = jax.random.split(keys[2 * m + 1])
        wg = jax.random.uniform(kw, (fusion_lat, 1), jnp.float32, -bg_b, bg_b)
        bg = jax.random.uniform(kb, (1,), jnp.float32, -bg_b, bg_b)
        gate_params.append((wg, bg))
    bound = 1.0 / jnp.sqrt(fusion_lat)
    w_fin = jax.random.uniform(keys[-1], (fusion_lat, 1), jnp.float32, -bound, bound)
    return fusion_lat, proj_params, gate_params, w_fin


if __name__ == "__main__":
    key = jax.random.PRNGKey(0)
    kx, kp = jax.random.split(key)

    dims = [16, 24, 32]                              # fusion_lat = max(dims) = 32
    B = 8
    fusion_lat, proj_params, gate_params, w_fin = init_gate_fusion_params(kp, dims)

    zkeys = jax.random.split(kx, len(dims))
    zs = [jax.random.normal(zk, (B, d), jnp.float32) for zk, d in zip(zkeys, dims)]

    # Small-batch f32 path (single grid step).
    out = jax.block_until_ready(gate_fusion_forward(zs, proj_params, gate_params, w_fin))
    ref = gate_fusion_reference(zs, proj_params, gate_params, w_fin)
    assert out.shape == (B,)
    assert jnp.allclose(out, ref, atol=1e-4, rtol=1e-4)

    # Larger, non-multiple batch exercising the batch grid (padding + >=2 parallel steps).
    B2 = 300
    zkeys2 = jax.random.split(jax.random.PRNGKey(1), len(dims))
    zs2 = [jax.random.normal(zk, (B2, d), jnp.float32) for zk, d in zip(zkeys2, dims)]
    out2 = jax.block_until_ready(
        gate_fusion_forward(zs2, proj_params, gate_params, w_fin))
    ref2 = gate_fusion_reference(zs2, proj_params, gate_params, w_fin)
    assert out2.shape == (B2,)
    assert jnp.allclose(out2, ref2, atol=1e-4, rtol=1e-4)

    # bf16 MXU-input path (v5e/v6e/v7x): halves streamed bytes; accumulation and
    # all elementwise gate math remain f32, so tolerance is much tighter than a
    # bf16-accumulated path would need.
    out_bf16 = jax.block_until_ready(
        gate_fusion_forward(zs2, proj_params, gate_params, w_fin,
                            compute_dtype=jnp.bfloat16))
    assert jnp.allclose(out_bf16, ref2, atol=5e-2, rtol=5e-2)

    print("KERNEL_OK")
</pallas_src>

<mosaic_0001>
module attributes {stable_mosaic.version = 11 : i64} {
  func.func @_gate_fusion_kernel(%arg0: i32, %arg1: memref<8x128xf32, #tpu.memory_space<vmem>>, %arg2: memref<128x256xf32, #tpu.memory_space<vmem>>, %arg3: memref<1x256xf32, #tpu.memory_space<vmem>>, %arg4: memref<8x1xf32, #tpu.memory_space<vmem>>) attributes {dimension_semantics = [#tpu.dimension_semantics<parallel>], iteration_bounds = array<i64: 1>, scalar_prefetch = 0 : i64, scratch_operands = 0 : i64, tpu.core_type = #tpu.core_type<tc>, window_params = [{transform_indices = @transform_0, window_bounds = array<i64: 8, 128>}, {pipeline_mode = #tpu.pipeline_mode<synchronous>, transform_indices = @transform_1, window_bounds = array<i64: 128, 256>}, {pipeline_mode = #tpu.pipeline_mode<synchronous>, transform_indices = @transform_2, window_bounds = array<i64: 1, 256>}, {transform_indices = @transform_3, window_bounds = array<i64: 8, 1>}]} {
    %c0 = arith.constant 0 : index
    %c0_0 = arith.constant 0 : index
    %0 = vector.load %arg1[%c0, %c0_0] : memref<8x128xf32, #tpu.memory_space<vmem>>, vector<8x128xf32>
    %c0_1 = arith.constant 0 : index
    %c0_2 = arith.constant 0 : index
    %1 = vector.load %arg2[%c0_1, %c0_2] : memref<128x256xf32, #tpu.memory_space<vmem>>, vector<128x256xf32>
    %cst = arith.constant dense<0.000000e+00> : vector<8x256xf32>
    %2 = tpu.matmul %0, %1, %cst {dimension_numbers = #tpu.dot_dimension_numbers<[1], [0], [0], [1], [0, 0, 1, 1], [], []>} : vector<8x128xf32>, vector<128x256xf32>, vector<8x256xf32> -> vector<8x256xf32>
    %c0_3 = arith.constant 0 : index
    %c0_4 = arith.constant 0 : index
    %3 = vector.load %arg3[%c0_3, %c0_4] : memref<1x256xf32, #tpu.memory_space<vmem>>, vector<1x256xf32>
    %4 = vector.broadcast %3 : vector<1x256xf32> to vector<8x256xf32>
    %5 = arith.addf %2, %4 : vector<8x256xf32>
    %6 = vector.extract_strided_slice %5 {offsets = [0, 0], sizes = [8, 128], strides = [1, 1]} : vector<8x256xf32> to vector<8x128xf32>
    %7 = vector.extract_strided_slice %5 {offsets = [0, 128], sizes = [8, 128], strides = [1, 1]} : vector<8x256xf32> to vector<8x128xf32>
    %8 = arith.negf %6 : vector<8x128xf32>
    %9 = math.exp %8 : vector<8x128xf32>
    %cst_5 = arith.constant 1.000000e+00 : f32
    %10 = vector.broadcast %cst_5 : f32 to vector<8x128xf32>
    %11 = arith.addf %10, %9 : vector<8x128xf32>
    %12 = arith.divf %10, %11 : vector<8x128xf32>
    %13 = arith.mulf %12, %7 : vector<8x128xf32>
    %cst_6 = arith.constant dense<0.000000e+00> : vector<8xf32>
    %14 = vector.multi_reduction <add>, %13, %cst_6 [1] : vector<8x128xf32> to vector<8xf32>
    %15 = vector.shape_cast %14 : vector<8xf32> to vector<8x1xf32>
    %c0_7 = arith.constant 0 : index
    %c0_8 = arith.constant 0 : index
    %16 = vector.load %arg4[%c0_7, %c0_8] : memref<8x1xf32, #tpu.memory_space<vmem>>, vector<8x1xf32>
    tpu.vector_store %arg4[%c0_7, %c0_8], %15 {strides = array<i32>} : memref<8x1xf32, #tpu.memory_space<vmem>>, vector<8x1xf32>,
    return
  }
  func.func @transform_0(%arg0: i32) -> (i32, i32) {
    %c0_i32 = arith.constant 0 : i32
    %c0_i32_0 = arith.constant 0 : i32
    return %arg0, %c0_i32 : i32, i32
  }
  func.func @transform_1(%arg0: i32) -> (i32, i32) {
    %c0_i32 = arith.constant 0 : i32
    %c0_i32_0 = arith.constant 0 : i32
    %c0_i32_1 = arith.constant 0 : i32
    return %c0_i32, %c0_i32_0 : i32, i32
  }
  func.func @transform_2(%arg0: i32) -> (i32, i32) {
    %c0_i32 = arith.constant 0 : i32
    %c0_i32_0 = arith.constant 0 : i32
    %c0_i32_1 = arith.constant 0 : i32
    return %c0_i32, %c0_i32_0 : i32, i32
  }
  func.func @transform_3(%arg0: i32) -> (i32, i32) {
    %c0_i32 = arith.constant 0 : i32
    %c0_i32_0 = arith.constant 0 : i32
    return %arg0, %c0_i32 : i32, i32
  }
}

</mosaic_0001>

<llo_original>
// kernel: tpu_custom_call.1
$region0: #{tpu_custom_call.1}
  #allocation0 [shape = 'u32[]', space=smem, size = 0x4, offset = 0x4, fixed_abs, tag = 'smem constant byte address 0x4 - core index']
  #allocation1 [shape = 'u32[144,128]{1,0:T(1,128)}', space=vmem, size = 0x12000, scoped, tag = 'internal scratch']
  %s0 = inlined_call_operand.hbm [shape: f32[8,128], index: 0, kind: input, shape index: {}]
  %s1 = inlined_call_operand.hbm [shape: f32[128,256], index: 1, kind: input, shape index: {}]
  %s2 = inlined_call_operand.vmem [shape: f32[1,256], index: 2, kind: input, shape index: {}]
  %s3 = inlined_call_operand.vmem [shape: f32[8,1], index: 3, kind: output, shape index: {}]
  %s4 = sld [smem:[#allocation0]]
  $region30: #{tpu_custom_call.1} parent=0
    _
  %s6 = ssub.s32 1, %s4
  %s7 = scalar_select 0, %s6, %s4
  $region1: #{tpu_custom_call.1} parent=0
    #allocation2 [shape = 'u8[4096]{0}', space=vmem, size = 0x1000, scoped, tag = 'input window, operand 0, single buffered']
    #allocation3 [shape = 's32[1]{0}', space=sflag, size = 0x4, scoped, tag = 'scoped memory for tpu_custom_call.1']
    #allocation4 [shape = 'u8[131072]{0}', space=vmem, size = 0x20000, scoped, tag = 'input window, operand 1, single buffered']
    #allocation5 [shape = 's32[1]{0}', space=sflag, size = 0x4, scoped, tag = 'scoped memory for tpu_custom_call.1']
    %8 = vsyncpa [#allocation3], 0
    %9 = vsyncpa [#allocation5], 0
    // Predicated region
    $region2: #{tpu_custom_call.1} parent=1 // pred_check
      _
    $region3: #{tpu_custom_call.1} parent=1 // pred_check_branch
      %11 = sbr.rel (0) target = $region5
    $region4: #{tpu_custom_call.1} parent=1 // pred_region
      %s13 = ssub.s32 128, 128
      %14 = vsyncadd [#allocation3], %s13
      %s16 = sshll.u32 [#allocation2], 4
      %s17 = int_to_ptr.vmem [resolvable:$true] %s16
      %19 = dma.hbm_to_vmem [thread:$0]  %s0, 128, %s17, [#allocation3]
    $region5: #{tpu_custom_call.1} parent=1 // pred_fallthru
      _
    // Predicated region
    $region6: #{tpu_custom_call.1} parent=1 // pred_check
      _
    $region7: #{tpu_custom_call.1} parent=1 // pred_check_branch
      %21 = sbr.rel (0) target = $region9
    $region8: #{tpu_custom_call.1} parent=1 // pred_region
      %s23 = ssub.s32 4096, 4096
      %24 = vsyncadd [#allocation5], %s23
      %s25 = sshll.u32 [#allocation4], 4
      %s26 = int_to_ptr.vmem [resolvable:$true] %s25
      %31 = dma.hbm_to_vmem [thread:$0]  %s1, 4096, %s26, [#allocation5], 256, 256, 16
    $region9: #{tpu_custom_call.1} parent=1 // pred_fallthru
      _
    // Predicated region
    $region10: #{tpu_custom_call.1} parent=1 // pred_check
      _
    $region11: #{tpu_custom_call.1} parent=1 // pred_check_branch
      %33 = sbr.rel (0) target = $region13
    $region12: #{tpu_custom_call.1} parent=1 // pred_region
      _
    $region13: #{tpu_custom_call.1} parent=1 // pred_fallthru
      _
    // Predicated region
    $region14: #{tpu_custom_call.1} parent=1 // pred_check
      _
    $region15: #{tpu_custom_call.1} parent=1 // pred_check_branch
      %35 = sbr.rel (0) target = $region17
    $region16: #{tpu_custom_call.1} parent=1 // pred_region
      %36 = dma.done [#allocation3], 128
    $region17: #{tpu_custom_call.1} parent=1 // pred_fallthru
      _
    // Predicated region
    $region18: #{tpu_custom_call.1} parent=1 // pred_check
      _
    $region19: #{tpu_custom_call.1} parent=1 // pred_check_branch
      %38 = sbr.rel (0) target = $region21
    $region20: #{tpu_custom_call.1} parent=1 // pred_region
      %39 = dma.done [#allocation5], 4096
    $region21: #{tpu_custom_call.1} parent=1 // pred_fallthru
      _
    %v40 = vld [vmem:[#allocation2] sm:$0xff]
    %v41 = vld [vmem:[#allocation4] sm:$0xff]
    %v42 = vld [vmem:[#allocation4 + $0x8] sm:$0xff]
    %v43 = vld [vmem:[#allocation4 + $0x10] sm:$0xff]
    %v44 = vld [vmem:[#allocation4 + $0x18] sm:$0xff]
    %v45 = vld [vmem:[#allocation4 + $0x20] sm:$0xff]
    %v46 = vld [vmem:[#allocation4 + $0x28] sm:$0xff]
    %v47 = vld [vmem:[#allocation4 + $0x30] sm:$0xff]
    %v48 = vld [vmem:[#allocation4 + $0x38] sm:$0xff]
    %v49 = vld [vmem:[#allocation4 + $0x40] sm:$0xff]
    %v50 = vld [vmem:[#allocation4 + $0x48] sm:$0xff]
    %v51 = vld [vmem:[#allocation4 + $0x50] sm:$0xff]
    %v52 = vld [vmem:[#allocation4 + $0x58] sm:$0xff]
    %v53 = vld [vmem:[#allocation4 + $0x60] sm:$0xff]
    %v54 = vld [vmem:[#allocation4 + $0x68] sm:$0xff]
    %v55 = vld [vmem:[#allocation4 + $0x70] sm:$0xff]
    %v56 = vld [vmem:[#allocation4 + $0x78] sm:$0xff]
    %v57 = vld [vmem:[#allocation4 + $0x80] sm:$0xff]
    %v58 = vld [vmem:[#allocation4 + $0x88] sm:$0xff]
    %v59 = vld [vmem:[#allocation4 + $0x90] sm:$0xff]
    %v60 = vld [vmem:[#allocation4 + $0x98] sm:$0xff]
    %v61 = vld [vmem:[#allocation4 + $0xa0] sm:$0xff]
    %v62 = vld [vmem:[#allocation4 + $0xa8] sm:$0xff]
    %v63 = vld [vmem:[#allocation4 + $0xb0] sm:$0xff]
    %v64 = vld [vmem:[#allocation4 + $0xb8] sm:$0xff]
    %v65 = vld [vmem:[#allocation4 + $0xc0] sm:$0xff]
    %v66 = vld [vmem:[#allocation4 + $0xc8] sm:$0xff]
    %v67 = vld [vmem:[#allocation4 + $0xd0] sm:$0xff]
    %v68 = vld [vmem:[#allocation4 + $0xd8] sm:$0xff]
    %v69 = vld [vmem:[#allocation4 + $0xe0] sm:$0xff]
    %v70 = vld [vmem:[#allocation4 + $0xe8] sm:$0xff]
    %v71 = vld [vmem:[#allocation4 + $0xf0] sm:$0xff]
    %v72 = vld [vmem:[#allocation4 + $0xf8] sm:$0xff]
    %v73 = vld [vmem:[%s2] sm:$0x3]
    %v75 = vlaneseq
    %v76 = vshrl.u32 %v75, 7
    %v77 = vsub.s32 0, %v76
    %v78 = vrot.slane %v73, %v77
    %v79 = vlaneseq
    %v80 = vshrl.u32 %v79, 7
    %v81 = vsub.s32 1, %v80
    %v82 = vrot.slane %v73, %v81
    %85 = vmatprep.subr.mxu0 %v42
    %86 = vmatpush1.msra.mxu0 %v41
    %87 = vmatprep.subr.mxu0 %v44
    %88 = vmatpush1.msra.mxu0 %v43
    %89 = vmatprep.subr.mxu0 %v46
    %90 = vmatpush1.msra.mxu0 %v45
    %91 = vmatprep.subr.mxu0 %v48
    %92 = vmatpush1.msra.mxu0 %v47
    %93 = vmatprep.subr.mxu0 %v50
    %94 = vmatpush1.msra.mxu0 %v49
    %95 = vmatprep.subr.mxu0 %v52
    %96 = vmatpush1.msra.mxu0 %v51
    %97 = vmatprep.subr.mxu0 %v54
    %98 = vmatpush1.msra.mxu0 %v53
    %99 = vmatprep.subr.mxu0 %v56
    %100 = vmatpush1.msra.mxu0 %v55
    %101 = vmatprep.subr.mxu0 %v58
    %102 = vmatpush1.msra.mxu0 %v57
    %103 = vmatprep.subr.mxu0 %v60
    %104 = vmatpush1.msra.mxu0 %v59
    %105 = vmatprep.subr.mxu0 %v62
    %106 = vmatpush1.msra.mxu0 %v61
    %107 = vmatprep.subr.mxu0 %v64
    %108 = vmatpush1.msra.mxu0 %v63
    %109 = vmatprep.subr.mxu0 %v66
    %110 = vmatpush1.msra.mxu0 %v65
    %111 = vmatprep.subr.mxu0 %v68
    %112 = vmatpush1.msra.mxu0 %v67
    %113 = vmatprep.subr.mxu0 %v70
    %114 = vmatpush1.msra.mxu0 %v69
    %115 = vmatprep.subr.mxu0 %v72
    %116 = vmatpush1.msra.mxu0 %v71
    %117 = vmatprep.subr.mxu0 0.0
    %118 = vmatpush1.msra.mxu0 0.0
    %119 = vmatprep.subr.mxu0 0.0
    %120 = vmatpush1.msra.mxu0 0.0
    %121 = vmatprep.subr.mxu0 0.0
    %122 = vmatpush1.msra.mxu0 0.0
    %123 = vmatprep.subr.mxu0 0.0
    %124 = vmatpush1.msra.mxu0 0.0
    %125 = vmatprep.subr.mxu0 0.0
    %126 = vmatpush1.msra.mxu0 0.0
    %127 = vmatprep.subr.mxu0 0.0
    %128 = vmatpush1.msra.mxu0 0.0
    %129 = vmatprep.subr.mxu0 0.0
    %130 = vmatpush1.msra.mxu0 0.0
    %131 = vmatprep.subr.mxu0 0.0
    %132 = vmatpush1.msra.mxu0 0.0
    %133 = vmatprep.subr.mxu0 0.0
    %134 = vmatpush1.msra.mxu0 0.0
    %135 = vmatprep.subr.mxu0 0.0
    %136 = vmatpush1.msra.mxu0 0.0
    %137 = vmatprep.subr.mxu0 0.0
    %138 = vmatpush1.msra.mxu0 0.0
    %139 = vmatprep.subr.mxu0 0.0
    %140 = vmatpush1.msra.mxu0 0.0
    %141 = vmatprep.subr.mxu0 0.0
    %142 = vmatpush1.msra.mxu0 0.0
    %143 = vmatprep.subr.mxu0 0.0
    %144 = vmatpush1.msra.mxu0 0.0
    %145 = vmatprep.subr.mxu0 0.0
    %146 = vmatpush1.msra.mxu0 0.0
    %147 = vmatprep.subr.mxu0 0.0
    %148 = vmatpush1.msra.mxu0 0.0
    %149 = vmatprep.mubr.f32.mxu0 0.0
    %150 = vmatmul.mubr.f32.gmra.mrb[0].mxu0 %v40
    %v151 = vpop.f32.mrb[0].mxu0
    %v152 = vadd.f32 %v78, %v151
    %v153 = vpop.f32.mrb[0].mxu0
    %v154 = vadd.f32 %v82, %v153
    %155 = vdwg.mxu0
    %v156 = vxor.u32 %v152, 2147483648
    %v157 = vmul.f32 %v156, 1.442695
    %v158 = vpow.pop %v157
    %v159 = vadd.f32 %v158, 1.0
    %v160 = vrcp.pop %v159
    %v161 = vmul.f32 1.0, %v160
    %v162 = vmul.f32 %v161, %v154
    %163 = vadd.xlane.f32.xlu0 %v162
    %v164 = vpop.xlane.xlu0 %163
    %vm165 = vcmask 7168
    %166 = vst.msk [vmem:[%s3] sm:$0xff] %vm165, %v164
    // Predicated region
    $region22: #{tpu_custom_call.1} parent=1 // pred_check
      _
    $region23: #{tpu_custom_call.1} parent=1 // pred_check_branch
      %168 = sbr.rel (0) target = $region25
    $region24: #{tpu_custom_call.1} parent=1 // pred_region
      _
    $region25: #{tpu_custom_call.1} parent=1 // pred_fallthru
      _
    // Predicated region
    $region26: #{tpu_custom_call.1} parent=1 // pred_check
      _
    $region27: #{tpu_custom_call.1} parent=1 // pred_check_branch
      %170 = sbr.rel (0) target = $region29
    $region28: #{tpu_custom_call.1} parent=1 // pred_region
      _
    $region29: #{tpu_custom_call.1} parent=1 // pred_fallthru
      _
    %171 = vsyncpa [#allocation3], 1
    %172 = vsyncpa [#allocation5], 1

</llo_original>
